<compile_context>
chip_gen: v7x
topology: tpu7x:2x2x1
jax: 0.10.0
libtpu: 0.0.40
codegen_flags: <defaults>
</compile_context>

<pallas_src>
import jax
import jax.numpy as jnp
from jax.experimental import pallas as pl
from jax.experimental.pallas import tpu as pltpu

_MIB = 1024 * 1024


def _round_up(x, m):
    return ((x + m - 1) // m) * m


def _ceil_div(a, b):
    return -(-a // b)


def _vmem_capacity_bytes():
    """Best-effort physical VMEM per core; conservative fallback."""
    try:
        return int(pltpu.get_tpu_info().vmem_capacity_bytes)
    except Exception:
        pass
    try:
        kind = jax.devices()[0].device_kind.lower()
        if "v7" in kind:
            return 64 * _MIB
        return 128 * _MIB
    except Exception:
        return 64 * _MIB  # conservative (v7x-sized)


def _num_tensorcores():
    try:
        kind = jax.devices()[0].device_kind.lower()
        return 2 if "v7" in kind else 1
    except Exception:
        return 1


def _choose_tile_b(B, cap, avail_bytes, per_row_bytes, num_tc=1):
    """Largest multiple-of-8 batch tile that fits the byte budget."""
    if B <= 8:
        return B
    tb_max = min(cap, _round_up(B, 8))
    by_budget = avail_bytes // max(per_row_bytes, 1)
    tb = min(tb_max, max(8, (by_budget // 8) * 8))
    # v7x megacore: make sure every TensorCore gets at least one grid step.
    if num_tc > 1:
        per_core = _round_up(_ceil_div(B, num_tc), 8)
        tb = min(tb, max(8, per_core))
    return tb


def _choose_tile_n(nc_pad, D, w_bytes, budget):
    """Class-tile width: multiple of 128 that divides nc_pad (no garbage lanes)."""
    for tn in (4096, 2048, 1024, 512, 256, 128):
        if nc_pad % tn == 0 and 2 * D * tn * w_bytes <= budget // 3:
            return tn
    return 128


# ---------------------------------------------------------------------------
# Kernels
# ---------------------------------------------------------------------------
def _resident_kernel(x_ref, w_ref, b_ref, o_ref):
    # logits = x @ W_t + b  (W_t is (D, NC_pad); padded class bias = -1e30)
    logits = jnp.dot(x_ref[...], w_ref[...], preferred_element_type=jnp.float32)
    logits = logits + b_ref[...]
    m = jnp.max(logits, axis=-1, keepdims=True)
    shifted = logits - m
    lse = jnp.log(jnp.sum(jnp.exp(shifted), axis=-1, keepdims=True))
    o_ref[...] = (shifted - lse).astype(o_ref.dtype)


def _tiled_kernel(x_ref, w_ref, b_ref, logits_ref, lse_ref, m_sc, l_sc):
    # Class axis is the (last, "arbitrary") grid axis: online log-sum-exp.
    j = pl.program_id(1)

    @pl.when(j == 0)
    def _():
        m_sc[...] = jnp.full_like(m_sc, -jnp.inf)
        l_sc[...] = jnp.zeros_like(l_sc)

    logits = jnp.dot(x_ref[...], w_ref[...], preferred_element_type=jnp.float32)
    logits = logits + b_ref[...]
    logits_ref[...] = logits  # stage unnormalized logits (f32)

    m_prev = m_sc[...]
    m_new = jnp.maximum(m_prev, jnp.max(logits, axis=-1, keepdims=True))
    l_sc[...] = (jnp.exp(m_prev - m_new) * l_sc[...]
                 + jnp.sum(jnp.exp(logits - m_new), axis=-1, keepdims=True))
    m_sc[...] = m_new

    @pl.when(j == pl.num_programs(1) - 1)
    def _():
        lse_ref[...] = m_sc[...] + jnp.log(l_sc[...])


# ---------------------------------------------------------------------------
# Parameter prep (one-time, off the hot path)
# ---------------------------------------------------------------------------
def prepare_params(weight, bias, *, lane=128, param_dtype=jnp.float32):
    """weight: (nclass, D) as in nn.Linear; bias: (nclass,).

    Returns w_t: (D, NC_pad) in param_dtype (pass jnp.bfloat16 here for the
    bf16 MXU path — valid on v5e/v6e/v7x, softmax stays f32), and
    b_pad: (1, NC_pad) f32 with -1e30 in padded slots (exp underflows to 0).
    """
    nclass, d = weight.shape
    nc_pad = _round_up(nclass, lane)
    w_t = jnp.zeros((d, nc_pad), param_dtype)
    w_t = w_t.at[:, :nclass].set(weight.astype(param_dtype).T)
    b_pad = jnp.full((1, nc_pad), jnp.float32(-1e30))
    b_pad = b_pad.at[0, :nclass].set(bias.astype(jnp.float32))
    return w_t, b_pad


# ---------------------------------------------------------------------------
# Forward: log_softmax(x @ W.T + b, axis=1)
# ---------------------------------------------------------------------------
def linear_logsoftmax(x, w_t, b_pad, nclass, *, force_path=None):
    """x: (B, D); w_t: (D, NC_pad); b_pad: (1, NC_pad) -> (B, nclass)."""
    B, D = x.shape
    nc_pad = w_t.shape[1]
    out_dtype = x.dtype

    x_bytes = x.dtype.itemsize
    w_bytes = w_t.dtype.itemsize
    o_bytes = jnp.dtype(out_dtype).itemsize

    vmem_cap = _vmem_capacity_bytes()
    vmem_limit = int(min(100 * _MIB, vmem_cap - 16 * _MIB))
    budget = int(vmem_limit * 0.9)
    num_tc = _num_tensorcores()
    tb_cap = 512 if vmem_cap >= 96 * _MIB else 256

    w_resident_bytes = D * nc_pad * w_bytes + nc_pad * 4  # weight + bias (1 buf)

    path = force_path
    if path is None:
        path = "resident" if w_resident_bytes <= budget // 3 else "tiled"

    if path == "resident":
        # ------- weight stays fully resident in VMEM; grid over batch only -----
        per_row = (2 * D * x_bytes            # double-buffered x tile
                   + 2 * nc_pad * o_bytes     # double-buffered out tile
                   + 3 * nc_pad * 4)          # epilogue f32 transients (approx)
        tb = _choose_tile_b(B, tb_cap, budget - w_resident_bytes, per_row, num_tc)
        grid = (pl.cdiv(B, tb),)

        bytes_accessed = (B * D * x_bytes + D * nc_pad * w_bytes
                          + nc_pad * 4 + B * nc_pad * o_bytes)

        def build(single_buffer):
            const = dict(pipeline_mode=pl.Buffered(1)) if single_buffer else {}
            return pl.pallas_call(
                _resident_kernel,
                out_shape=jax.ShapeDtypeStruct((B, nc_pad), out_dtype),
                grid_spec=pltpu.PrefetchScalarGridSpec(
                    num_scalar_prefetch=0,
                    grid=grid,
                    in_specs=[
                        pl.BlockSpec((tb, D), lambda i: (i, 0)),
                        pl.BlockSpec((D, nc_pad), lambda i: (0, 0), **const),
                        pl.BlockSpec((1, nc_pad), lambda i: (0, 0), **const),
                    ],
                    out_specs=pl.BlockSpec((tb, nc_pad), lambda i: (i, 0)),
                ),
                compiler_params=pltpu.CompilerParams(
                    dimension_semantics=("parallel",),
                    vmem_limit_bytes=vmem_limit,
                ),
                cost_estimate=pl.CostEstimate(
                    flops=2 * B * D * nc_pad,
                    transcendentals=B * nc_pad,
                    bytes_accessed=bytes_accessed,
                ),
            )

        try:
            out = build(True)(x, w_t, b_pad)
        except Exception:
            # Fallback if this JAX build rejects Buffered(1) on a constant block.
            out = build(False)(x, w_t, b_pad)
        return out[:, :nclass]

    # ------- large-nclass path: class-tiled weight + online log-sum-exp -------
    tn = _choose_tile_n(nc_pad, D, w_bytes, budget)
    avail = budget - (2 * D * tn * w_bytes + 2 * tn * 4)
    per_row = (2 * D * x_bytes          # x tile (resident across class axis)
               + 2 * tn * 4             # double-buffered logits out tile (f32)
               + 3 * tn * 4             # transients
               + 16)                    # m/l scratch rows
    tb = _choose_tile_b(B, tb_cap, avail, per_row, num_tc)
    nb = pl.cdiv(B, tb)
    grid = (nb, nc_pad // tn)

    bytes_accessed = (B * D * x_bytes + nb * D * nc_pad * w_bytes
                      + nb * nc_pad * 4 + B * nc_pad * 4 + B * 4)

    logits, lse = pl.pallas_call(
        _tiled_kernel,
        out_shape=(jax.ShapeDtypeStruct((B, nc_pad), jnp.float32),
                   jax.ShapeDtypeStruct((B, 1), jnp.float32)),
        grid_spec=pltpu.PrefetchScalarGridSpec(
            num_scalar_prefetch=0,
            grid=grid,
            in_specs=[
                pl.BlockSpec((tb, D), lambda i, j: (i, 0)),   # x: resident over j
                pl.BlockSpec((D, tn), lambda i, j: (0, j)),   # weight tile
                pl.BlockSpec((1, tn), lambda i, j: (0, j)),   # bias tile
            ],
            out_specs=[
                pl.BlockSpec((tb, tn), lambda i, j: (i, j)),  # unnormalized logits
                pl.BlockSpec((tb, 1), lambda i, j: (i, 0)),   # per-row lse
            ],
            scratch_shapes=[pltpu.VMEM((tb, 1), jnp.float32),   # running max
                            pltpu.VMEM((tb, 1), jnp.float32)],  # running sum
        ),
        compiler_params=pltpu.CompilerParams(
            dimension_semantics=("parallel", "arbitrary"),
            vmem_limit_bytes=vmem_limit,
        ),
        cost_estimate=pl.CostEstimate(
            flops=2 * B * D * nc_pad,
            transcendentals=2 * B * nc_pad,
            bytes_accessed=bytes_accessed,
        ),
    )(x, w_t, b_pad)

    # Finalize: one fused broadcast-subtract pass (two-pass LSE), then slice pad.
    return (logits[:, :nclass] - lse).astype(out_dtype)


# TODO(synk): nn.NLLLoss is defined in the module's __init__ but is not part of
# forward(), so it is intentionally not implemented here.

if __name__ == "__main__":
    key = jax.random.PRNGKey(0)

    # ---- Case 1: module-consistent small shapes (weight-resident path) ----
    B, D, NCLASS = 8, 32, 16
    kx, kw, kb = jax.random.split(key, 3)
    bound = 1.0 / (D ** 0.5)
    weight = jax.random.uniform(kw, (NCLASS, D), jnp.float32, -bound, bound)
    bias = jax.random.uniform(kb, (NCLASS,), jnp.float32, -bound, bound)
    x = jax.random.normal(kx, (B, D), jnp.float32)

    w_t, b_pad = prepare_params(weight, bias)          # one-time prep
    out = jax.block_until_ready(linear_logsoftmax(x, w_t, b_pad, NCLASS))

    ref = jax.nn.log_softmax(x @ weight.T + bias, axis=1)
    assert out.shape == (B, NCLASS)
    assert jnp.allclose(out, ref, atol=1e-5, rtol=1e-5)

    # ---- Case 2: ragged batch + class-tiled online-LSE path (no jnp.pad) ----
    B2, D2, NCLASS2 = 10, 32, 300
    k2x, k2w, k2b = jax.random.split(jax.random.PRNGKey(1), 3)
    bound2 = 1.0 / (D2 ** 0.5)
    weight2 = jax.random.uniform(k2w, (NCLASS2, D2), jnp.float32, -bound2, bound2)
    bias2 = jax.random.uniform(k2b, (NCLASS2,), jnp.float32, -bound2, bound2)
    x2 = jax.random.normal(k2x, (B2, D2), jnp.float32)

    w_t2, b_pad2 = prepare_params(weight2, bias2)
    out2 = jax.block_until_ready(
        linear_logsoftmax(x2, w_t2, b_pad2, NCLASS2, force_path="tiled"))

    ref2 = jax.nn.log_softmax(x2 @ weight2.T + bias2, axis=1)
    assert out2.shape == (B2, NCLASS2)
    assert jnp.allclose(out2, ref2, atol=1e-4, rtol=1e-4)

    print("KERNEL_OK")
</pallas_src>

<mosaic_0001>
module attributes {stable_mosaic.version = 11 : i64} {
  func.func @_resident_kernel(%arg0: i32, %arg1: memref<8x32xf32, #tpu.memory_space<vmem>>, %arg2: memref<32x128xf32, #tpu.memory_space<vmem>>, %arg3: memref<1x128xf32, #tpu.memory_space<vmem>>, %arg4: memref<8x128xf32, #tpu.memory_space<vmem>>) attributes {dimension_semantics = [#tpu.dimension_semantics<parallel>], iteration_bounds = array<i64: 1>, scalar_prefetch = 0 : i64, scratch_operands = 0 : i64, tpu.core_type = #tpu.core_type<tc>, window_params = [{transform_indices = @transform_0, window_bounds = array<i64: 8, 32>}, {pipeline_mode = #tpu.pipeline_mode<synchronous>, transform_indices = @transform_1, window_bounds = array<i64: 32, 128>}, {pipeline_mode = #tpu.pipeline_mode<synchronous>, transform_indices = @transform_2, window_bounds = array<i64: 1, 128>}, {transform_indices = @transform_3, window_bounds = array<i64: 8, 128>}]} {
    %c0 = arith.constant 0 : index
    %c0_0 = arith.constant 0 : index
    %0 = vector.load %arg1[%c0, %c0_0] : memref<8x32xf32, #tpu.memory_space<vmem>>, vector<8x32xf32>
    %c0_1 = arith.constant 0 : index
    %c0_2 = arith.constant 0 : index
    %1 = vector.load %arg2[%c0_1, %c0_2] : memref<32x128xf32, #tpu.memory_space<vmem>>, vector<32x128xf32>
    %cst = arith.constant dense<0.000000e+00> : vector<8x128xf32>
    %2 = tpu.matmul %0, %1, %cst {dimension_numbers = #tpu.dot_dimension_numbers<[1], [0], [0], [1], [0, 0, 1, 1], [], []>} : vector<8x32xf32>, vector<32x128xf32>, vector<8x128xf32> -> vector<8x128xf32>
    %c0_3 = arith.constant 0 : index
    %c0_4 = arith.constant 0 : index
    %3 = vector.load %arg3[%c0_3, %c0_4] : memref<1x128xf32, #tpu.memory_space<vmem>>, vector<1x128xf32>
    %4 = vector.broadcast %3 : vector<1x128xf32> to vector<8x128xf32>
    %5 = arith.addf %2, %4 : vector<8x128xf32>
    %cst_5 = arith.constant dense<0xFF800000> : vector<8xf32>
    %6 = vector.multi_reduction <maximumf>, %5, %cst_5 [1] : vector<8x128xf32> to vector<8xf32>
    %7 = vector.shape_cast %6 : vector<8xf32> to vector<8x1xf32>
    %8 = vector.broadcast %7 : vector<8x1xf32> to vector<8x128xf32>
    %9 = arith.subf %5, %8 : vector<8x128xf32>
    %10 = math.exp %9 : vector<8x128xf32>
    %cst_6 = arith.constant dense<0.000000e+00> : vector<8xf32>
    %11 = vector.multi_reduction <add>, %10, %cst_6 [1] : vector<8x128xf32> to vector<8xf32>
    %12 = vector.shape_cast %11 : vector<8xf32> to vector<8x1xf32>
    %13 = math.log %12 : vector<8x1xf32>
    %14 = vector.broadcast %13 : vector<8x1xf32> to vector<8x128xf32>
    %15 = arith.subf %9, %14 : vector<8x128xf32>
    %c0_7 = arith.constant 0 : index
    %c0_8 = arith.constant 0 : index
    %16 = vector.load %arg4[%c0_7, %c0_8] : memref<8x128xf32, #tpu.memory_space<vmem>>, vector<8x128xf32>
    tpu.vector_store %arg4[%c0_7, %c0_8], %15 {strides = array<i32>} : memref<8x128xf32, #tpu.memory_space<vmem>>, vector<8x128xf32>,
    return
  }
  func.func @transform_0(%arg0: i32) -> (i32, i32) {
    %c0_i32 = arith.constant 0 : i32
    %c0_i32_0 = arith.constant 0 : i32
    return %arg0, %c0_i32 : i32, i32
  }
  func.func @transform_1(%arg0: i32) -> (i32, i32) {
    %c0_i32 = arith.constant 0 : i32
    %c0_i32_0 = arith.constant 0 : i32
    %c0_i32_1 = arith.constant 0 : i32
    return %c0_i32, %c0_i32_0 : i32, i32
  }
  func.func @transform_2(%arg0: i32) -> (i32, i32) {
    %c0_i32 = arith.constant 0 : i32
    %c0_i32_0 = arith.constant 0 : i32
    %c0_i32_1 = arith.constant 0 : i32
    return %c0_i32, %c0_i32_0 : i32, i32
  }
  func.func @transform_3(%arg0: i32) -> (i32, i32) {
    %c0_i32 = arith.constant 0 : i32
    %c0_i32_0 = arith.constant 0 : i32
    return %arg0, %c0_i32 : i32, i32
  }
}

module attributes {stable_mosaic.version = 11 : i64} {
  func.func @_resident_kernel(%arg0: i32, %arg1: memref<8x32xf32, #tpu.memory_space<vmem>>, %arg2: memref<32x128xf32, #tpu.memory_space<vmem>>, %arg3: memref<1x128xf32, #tpu.memory_space<vmem>>, %arg4: memref<8x128xf32, #tpu.memory_space<vmem>>) attributes {dimension_semantics = [#tpu.dimension_semantics<parallel>], iteration_bounds = array<i64: 1>, scalar_prefetch = 0 : i64, scratch_operands = 0 : i64, tpu.core_type = #tpu.core_type<tc>, window_params = [{transform_indices = @transform_0, window_bounds = array<i64: 8, 32>}, {pipeline_mode = #tpu.pipeline_mode<synchronous>, transform_indices = @transform_1, window_bounds = array<i64: 32, 128>}, {pipeline_mode = #tpu.pipeline_mode<synchronous>, transform_indices = @transform_2, window_bounds = array<i64: 1, 128>}, {transform_indices = @transform_3, window_bounds = array<i64: 8, 128>}]} {
    %c0 = arith.constant 0 : index
    %c0_0 = arith.constant 0 : index
    %0 = vector.load %arg1[%c0, %c0_0] : memref<8x32xf32, #tpu.memory_space<vmem>>, vector<8x32xf32>
    %c0_1 = arith.constant 0 : index
    %c0_2 = arith.constant 0 : index
    %1 = vector.load %arg2[%c0_1, %c0_2] : memref<32x128xf32, #tpu.memory_space<vmem>>, vector<32x128xf32>
    %cst = arith.constant dense<0.000000e+00> : vector<8x128xf32>
    %2 = tpu.matmul %0, %1, %cst {dimension_numbers = #tpu.dot_dimension_numbers<[1], [0], [0], [1], [0, 0, 1, 1], [], []>} : vector<8x32xf32>, vector<32x128xf32>, vector<8x128xf32> -> vector<8x128xf32>
    %c0_3 = arith.constant 0 : index
    %c0_4 = arith.constant 0 : index
    %3 = vector.load %arg3[%c0_3, %c0_4] : memref<1x128xf32, #tpu.memory_space<vmem>>, vector<1x128xf32>
    %4 = vector.broadcast %3 : vector<1x128xf32> to vector<8x128xf32>
    %5 = arith.addf %2, %4 : vector<8x128xf32>
    %cst_5 = arith.constant dense<0xFF800000> : vector<8xf32>
    %6 = vector.multi_reduction <maximumf>, %5, %cst_5 [1] : vector<8x128xf32> to vector<8xf32>
    %7 = vector.shape_cast %6 : vector<8xf32> to vector<8x1xf32>
    %8 = vector.broadcast %7 : vector<8x1xf32> to vector<8x128xf32>
    %9 = arith.subf %5, %8 : vector<8x128xf32>
    %10 = math.exp %9 : vector<8x128xf32>
    %cst_6 = arith.constant dense<0.000000e+00> : vector<8xf32>
    %11 = vector.multi_reduction <add>, %10, %cst_6 [1] : vector<8x128xf32> to vector<8xf32>
    %12 = vector.shape_cast %11 : vector<8xf32> to vector<8x1xf32>
    %13 = math.log %12 : vector<8x1xf32>
    %14 = vector.broadcast %13 : vector<8x1xf32> to vector<8x128xf32>
    %15 = arith.subf %9, %14 : vector<8x128xf32>
    %c0_7 = arith.constant 0 : index
    %c0_8 = arith.constant 0 : index
    %16 = vector.load %arg4[%c0_7, %c0_8] : memref<8x128xf32, #tpu.memory_space<vmem>>, vector<8x128xf32>
    tpu.vector_store %arg4[%c0_7, %c0_8], %15 {strides = array<i32>} : memref<8x128xf32, #tpu.memory_space<vmem>>, vector<8x128xf32>,
    return
  }
  func.func @transform_0(%arg0: i32) -> (i32, i32) {
    %c0_i32 = arith.constant 0 : i32
    %c0_i32_0 = arith.constant 0 : i32
    return %arg0, %c0_i32 : i32, i32
  }
  func.func @transform_1(%arg0: i32) -> (i32, i32) {
    %c0_i32 = arith.constant 0 : i32
    %c0_i32_0 = arith.constant 0 : i32
    %c0_i32_1 = arith.constant 0 : i32
    return %c0_i32, %c0_i32_0 : i32, i32
  }
  func.func @transform_2(%arg0: i32) -> (i32, i32) {
    %c0_i32 = arith.constant 0 : i32
    %c0_i32_0 = arith.constant 0 : i32
    %c0_i32_1 = arith.constant 0 : i32
    return %c0_i32, %c0_i32_0 : i32, i32
  }
  func.func @transform_3(%arg0: i32) -> (i32, i32) {
    %c0_i32 = arith.constant 0 : i32
    %c0_i32_0 = arith.constant 0 : i32
    return %arg0, %c0_i32 : i32, i32
  }
}

</mosaic_0001>

<llo_original>
// kernel: tpu_custom_call.1
$region0: #{tpu_custom_call.1}
  #allocation0 [shape = 'u32[]', space=smem, size = 0x4, offset = 0x4, fixed_abs, tag = 'smem constant byte address 0x4 - core index']
  #allocation1 [shape = 'u32[144,128]{1,0:T(1,128)}', space=vmem, size = 0x12000, scoped, tag = 'internal scratch']
  %s0 = inlined_call_operand.hbm [shape: f32[8,32], index: 0, kind: input, shape index: {}]
  %s1 = inlined_call_operand.hbm [shape: f32[32,128], index: 1, kind: input, shape index: {}]
  %s2 = inlined_call_operand.hbm [shape: f32[1,128], index: 2, kind: input, shape index: {}]
  %s3 = inlined_call_operand.hbm [shape: f32[8,128], index: 3, kind: output, shape index: {}]
  %s4 = sld [smem:[#allocation0]]
  $region34: #{tpu_custom_call.1} parent=0
    _
  %s6 = ssub.s32 1, %s4
  %s7 = scalar_select 0, %s6, %s4
  $region1: #{tpu_custom_call.1} parent=0
    #allocation2 [shape = 'u8[4096]{0}', space=vmem, size = 0x1000, scoped, tag = 'input window, operand 0, single buffered']
    #allocation3 [shape = 's32[1]{0}', space=sflag, size = 0x4, scoped, tag = 'scoped memory for tpu_custom_call.1']
    #allocation4 [shape = 's32[1]{0}', space=sflag, size = 0x4, scoped, tag = 'scoped memory for tpu_custom_call.1']
    #allocation5 [shape = 'u8[16384]{0}', space=vmem, size = 0x4000, scoped, tag = 'input window, operand 1, single buffered']
    #allocation6 [shape = 's32[1]{0}', space=sflag, size = 0x4, scoped, tag = 'scoped memory for tpu_custom_call.1']
    #allocation7 [shape = 'u8[512]{0}', space=vmem, size = 0x400, scoped, tag = 'input window, operand 2, single buffered']
    #allocation8 [shape = 'u8[4096]{0}', space=vmem, size = 0x1000, scoped, tag = 'output window, operand 0, single buffered']
    %8 = vsyncpa [#allocation3], 0
    %9 = vsyncpa [#allocation6], 0
    %10 = vsyncpa [#allocation4], 0
    // Predicated region
    $region2: #{tpu_custom_call.1} parent=1 // pred_check
      _
    $region3: #{tpu_custom_call.1} parent=1 // pred_check_branch
      %12 = sbr.rel (0) target = $region5
    $region4: #{tpu_custom_call.1} parent=1 // pred_region
      %s14 = ssub.s32 128, 128
      %15 = vsyncadd [#allocation3], %s14
      %s17 = sshll.u32 [#allocation2], 4
      %s18 = int_to_ptr.vmem [resolvable:$true] %s17
      %20 = dma.hbm_to_vmem [thread:$0]  %s0, 128, %s18, [#allocation3]
    $region5: #{tpu_custom_call.1} parent=1 // pred_fallthru
      _
    // Predicated region
    $region6: #{tpu_custom_call.1} parent=1 // pred_check
      _
    $region7: #{tpu_custom_call.1} parent=1 // pred_check_branch
      %22 = sbr.rel (0) target = $region9
    $region8: #{tpu_custom_call.1} parent=1 // pred_region
      %s24 = ssub.s32 512, 512
      %25 = vsyncadd [#allocation6], %s24
      %s26 = sshll.u32 [#allocation5], 4
      %s27 = int_to_ptr.vmem [resolvable:$true] %s26
      %32 = dma.hbm_to_vmem [thread:$0]  %s1, 512, %s27, [#allocation6], 128, 128, 8
    $region9: #{tpu_custom_call.1} parent=1 // pred_fallthru
      _
    // Predicated region
    $region10: #{tpu_custom_call.1} parent=1 // pred_check
      _
    $region11: #{tpu_custom_call.1} parent=1 // pred_check_branch
      %34 = sbr.rel (0) target = $region13
    $region12: #{tpu_custom_call.1} parent=1 // pred_region
      %s36 = ssub.s32 16, 16
      %37 = vsyncadd [#allocation6], %s36
      %s39 = sshll.u32 [#allocation7], 4
      %s40 = int_to_ptr.vmem [resolvable:$true] %s39
      %42 = dma.hbm_to_vmem [thread:$0]  %s2, 16, %s40, [#allocation6]
    $region13: #{tpu_custom_call.1} parent=1 // pred_fallthru
      _
    // Predicated region
    $region14: #{tpu_custom_call.1} parent=1 // pred_check
      _
    $region15: #{tpu_custom_call.1} parent=1 // pred_check_branch
      %44 = sbr.rel (0) target = $region17
    $region16: #{tpu_custom_call.1} parent=1 // pred_region
      %45 = dma.done [#allocation3], 128
    $region17: #{tpu_custom_call.1} parent=1 // pred_fallthru
      _
    // Predicated region
    $region18: #{tpu_custom_call.1} parent=1 // pred_check
      _
    $region19: #{tpu_custom_call.1} parent=1 // pred_check_branch
      %47 = sbr.rel (0) target = $region21
    $region20: #{tpu_custom_call.1} parent=1 // pred_region
      %48 = dma.done [#allocation6], 512
    $region21: #{tpu_custom_call.1} parent=1 // pred_fallthru
      _
    // Predicated region
    $region22: #{tpu_custom_call.1} parent=1 // pred_check
      _
    $region23: #{tpu_custom_call.1} parent=1 // pred_check_branch
      %50 = sbr.rel (0) target = $region25
    $region24: #{tpu_custom_call.1} parent=1 // pred_region
      %51 = dma.done [#allocation6], 16
    $region25: #{tpu_custom_call.1} parent=1 // pred_fallthru
      _
    %v52 = vld [vmem:[#allocation2] sm:$0xff]
    %v53 = vld [vmem:[#allocation5] sm:$0xff]
    %v54 = vld [vmem:[#allocation5 + $0x8] sm:$0xff]
    %v55 = vld [vmem:[#allocation5 + $0x10] sm:$0xff]
    %v56 = vld [vmem:[#allocation5 + $0x18] sm:$0xff]
    %v57 = vld [vmem:[#allocation7] sm:$0x1]
    %v59 = vlaneseq
    %v60 = vshrl.u32 %v59, 7
    %v61 = vsub.s32 0, %v60
    %v62 = vrot.slane %v57, %v61
    %vm64 = vcmask 261120
    %v66 = vsel %vm64, %v52, 0
    %68 = vmatprep.subr.mxu0 0.0
    %69 = vmatpush1.msra.mxu0 %v53
    %70 = vmatprep.subr.mxu0 0.0
    %71 = vmatpush1.msra.mxu0 %v54
    %72 = vmatprep.subr.mxu0 0.0
    %73 = vmatpush1.msra.mxu0 %v55
    %74 = vmatprep.subr.mxu0 0.0
    %75 = vmatpush1.msra.mxu0 %v56
    %76 = vmatprep.subr.mxu0 0.0
    %77 = vmatpush1.msra.mxu0 0.0
    %78 = vmatprep.subr.mxu0 0.0
    %79 = vmatpush1.msra.mxu0 0.0
    %80 = vmatprep.subr.mxu0 0.0
    %81 = vmatpush1.msra.mxu0 0.0
    %82 = vmatprep.subr.mxu0 0.0
    %83 = vmatpush1.msra.mxu0 0.0
    %84 = vmatprep.subr.mxu0 0.0
    %85 = vmatpush1.msra.mxu0 0.0
    %86 = vmatprep.subr.mxu0 0.0
    %87 = vmatpush1.msra.mxu0 0.0
    %88 = vmatprep.subr.mxu0 0.0
    %89 = vmatpush1.msra.mxu0 0.0
    %90 = vmatprep.subr.mxu0 0.0
    %91 = vmatpush1.msra.mxu0 0.0
    %92 = vmatprep.subr.mxu0 0.0
    %93 = vmatpush1.msra.mxu0 0.0
    %94 = vmatprep.subr.mxu0 0.0
    %95 = vmatpush1.msra.mxu0 0.0
    %96 = vmatprep.subr.mxu0 0.0
    %97 = vmatpush1.msra.mxu0 0.0
    %98 = vmatprep.subr.mxu0 0.0
    %99 = vmatpush1.msra.mxu0 0.0
    %100 = vmatprep.subr.mxu0 0.0
    %101 = vmatpush1.msra.mxu0 0.0
    %102 = vmatprep.subr.mxu0 0.0
    %103 = vmatpush1.msra.mxu0 0.0
    %104 = vmatprep.subr.mxu0 0.0
    %105 = vmatpush1.msra.mxu0 0.0
    %106 = vmatprep.subr.mxu0 0.0
    %107 = vmatpush1.msra.mxu0 0.0
    %108 = vmatprep.subr.mxu0 0.0
    %109 = vmatpush1.msra.mxu0 0.0
    %110 = vmatprep.subr.mxu0 0.0
    %111 = vmatpush1.msra.mxu0 0.0
    %112 = vmatprep.subr.mxu0 0.0
    %113 = vmatpush1.msra.mxu0 0.0
    %114 = vmatprep.subr.mxu0 0.0
    %115 = vmatpush1.msra.mxu0 0.0
    %116 = vmatprep.subr.mxu0 0.0
    %117 = vmatpush1.msra.mxu0 0.0
    %118 = vmatprep.subr.mxu0 0.0
    %119 = vmatpush1.msra.mxu0 0.0
    %120 = vmatprep.subr.mxu0 0.0
    %121 = vmatpush1.msra.mxu0 0.0
    %122 = vmatprep.subr.mxu0 0.0
    %123 = vmatpush1.msra.mxu0 0.0
    %124 = vmatprep.subr.mxu0 0.0
    %125 = vmatpush1.msra.mxu0 0.0
    %126 = vmatprep.subr.mxu0 0.0
    %127 = vmatpush1.msra.mxu0 0.0
    %128 = vmatprep.subr.mxu0 0.0
    %129 = vmatpush1.msra.mxu0 0.0
    %130 = vmatprep.subr.mxu0 0.0
    %131 = vmatpush1.msra.mxu0 0.0
    %132 = vmatprep.mubr.f32.mxu0 0.0
    %133 = vmatmul.mubr.f32.gmra.mrb[0].mxu0 %v66
    %v134 = vpop.f32.mrb[0].mxu0
    %v135 = vadd.f32 %v62, %v134
    %v136 = vpop.f32.mrb[0].mxu0
    %137 = vdwg.mxu0
    %138 = vmax.xlane.f32.xlu0 %v135
    %v139 = vpop.xlane.xlu0 %138
    %v140 = vsub.f32 %v135, %v139
    %v141 = vmul.f32 %v140, 1.442695
    %v142 = vpow.pop %v141
    %143 = vadd.xlane.f32.xlu0 %v142
    %v144 = vpop.xlane.xlu0 %143
    %v145 = vlog2.pop %v144
    %v146 = vmul.f32 %v145, 0.6931472
    %v147 = vsub.f32 %v140, %v146
    %148 = vst [vmem:[#allocation8] sm:$0xff] %v147
    // Predicated region
    $region26: #{tpu_custom_call.1} parent=1 // pred_check
      _
    $region27: #{tpu_custom_call.1} parent=1 // pred_check_branch
      %150 = sbr.rel (0) target = $region29
    $region28: #{tpu_custom_call.1} parent=1 // pred_region
      %s152 = ssub.s32 128, 128
      %153 = vsyncadd [#allocation4], %s152
      %s155 = sshll.u32 [#allocation8], 4
      %s156 = int_to_ptr.vmem [resolvable:$true] %s155
      %158 = dma.vmem_to_hbm [thread:$0]  %s156, 128, %s3, [#allocation4]
    $region29: #{tpu_custom_call.1} parent=1 // pred_fallthru
      _
    // Predicated region
    $region30: #{tpu_custom_call.1} parent=1 // pred_check
      _
    $region31: #{tpu_custom_call.1} parent=1 // pred_check_branch
      %160 = sbr.rel (0) target = $region33
    $region32: #{tpu_custom_call.1} parent=1 // pred_region
      %161 = dma.done [#allocation4], 128
    $region33: #{tpu_custom_call.1} parent=1 // pred_fallthru
      _
    %162 = vsyncpa [#allocation3], 1
    %163 = vsyncpa [#allocation6], 1
    %164 = vsyncpa [#allocation4], 1

// kernel: tpu_custom_call.1
$region0: #{tpu_custom_call.1}
  #allocation0 [shape = 'u32[]', space=smem, size = 0x4, offset = 0x4, fixed_abs, tag = 'smem constant byte address 0x4 - core index']
  #allocation1 [shape = 'u32[144,128]{1,0:T(1,128)}', space=vmem, size = 0x12000, scoped, tag = 'internal scratch']
  %s0 = inlined_call_operand.hbm [shape: f32[8,32], index: 0, kind: input, shape index: {}]
  %s1 = inlined_call_operand.hbm [shape: f32[32,128], index: 1, kind: input, shape index: {}]
  %s2 = inlined_call_operand.hbm [shape: f32[1,128], index: 2, kind: input, shape index: {}]
  %s3 = inlined_call_operand.hbm [shape: f32[8,128], index: 3, kind: output, shape index: {}]
  %s4 = sld [smem:[#allocation0]]
  $region34: #{tpu_custom_call.1} parent=0
    _
  %s6 = ssub.s32 1, %s4
  %s7 = scalar_select 0, %s6, %s4
  $region1: #{tpu_custom_call.1} parent=0
    #allocation2 [shape = 'u8[4096]{0}', space=vmem, size = 0x1000, scoped, tag = 'input window, operand 0, single buffered']
    #allocation3 [shape = 's32[1]{0}', space=sflag, size = 0x4, scoped, tag = 'scoped memory for tpu_custom_call.1']
    #allocation4 [shape = 's32[1]{0}', space=sflag, size = 0x4, scoped, tag = 'scoped memory for tpu_custom_call.1']
    #allocation5 [shape = 'u8[16384]{0}', space=vmem, size = 0x4000, scoped, tag = 'input window, operand 1, single buffered']
    #allocation6 [shape = 's32[1]{0}', space=sflag, size = 0x4, scoped, tag = 'scoped memory for tpu_custom_call.1']
    #allocation7 [shape = 'u8[512]{0}', space=vmem, size = 0x400, scoped, tag = 'input window, operand 2, single buffered']
    #allocation8 [shape = 'u8[4096]{0}', space=vmem, size = 0x1000, scoped, tag = 'output window, operand 0, single buffered']
    %8 = vsyncpa [#allocation3], 0
    %9 = vsyncpa [#allocation6], 0
    %10 = vsyncpa [#allocation4], 0
    // Predicated region
    $region2: #{tpu_custom_call.1} parent=1 // pred_check
      _
    $region3: #{tpu_custom_call.1} parent=1 // pred_check_branch
      %12 = sbr.rel (0) target = $region5
    $region4: #{tpu_custom_call.1} parent=1 // pred_region
      %s14 = ssub.s32 128, 128
      %15 = vsyncadd [#allocation3], %s14
      %s17 = sshll.u32 [#allocation2], 4
      %s18 = int_to_ptr.vmem [resolvable:$true] %s17
      %20 = dma.hbm_to_vmem [thread:$0]  %s0, 128, %s18, [#allocation3]
    $region5: #{tpu_custom_call.1} parent=1 // pred_fallthru
      _
    // Predicated region
    $region6: #{tpu_custom_call.1} parent=1 // pred_check
      _
    $region7: #{tpu_custom_call.1} parent=1 // pred_check_branch
      %22 = sbr.rel (0) target = $region9
    $region8: #{tpu_custom_call.1} parent=1 // pred_region
      %s24 = ssub.s32 512, 512
      %25 = vsyncadd [#allocation6], %s24
      %s26 = sshll.u32 [#allocation5], 4
      %s27 = int_to_ptr.vmem [resolvable:$true] %s26
      %32 = dma.hbm_to_vmem [thread:$0]  %s1, 512, %s27, [#allocation6], 128, 128, 8
    $region9: #{tpu_custom_call.1} parent=1 // pred_fallthru
      _
    // Predicated region
    $region10: #{tpu_custom_call.1} parent=1 // pred_check
      _
    $region11: #{tpu_custom_call.1} parent=1 // pred_check_branch
      %34 = sbr.rel (0) target = $region13
    $region12: #{tpu_custom_call.1} parent=1 // pred_region
      %s36 = ssub.s32 16, 16
      %37 = vsyncadd [#allocation6], %s36
      %s39 = sshll.u32 [#allocation7], 4
      %s40 = int_to_ptr.vmem [resolvable:$true] %s39
      %42 = dma.hbm_to_vmem [thread:$0]  %s2, 16, %s40, [#allocation6]
    $region13: #{tpu_custom_call.1} parent=1 // pred_fallthru
      _
    // Predicated region
    $region14: #{tpu_custom_call.1} parent=1 // pred_check
      _
    $region15: #{tpu_custom_call.1} parent=1 // pred_check_branch
      %44 = sbr.rel (0) target = $region17
    $region16: #{tpu_custom_call.1} parent=1 // pred_region
      %45 = dma.done [#allocation3], 128
    $region17: #{tpu_custom_call.1} parent=1 // pred_fallthru
      _
    // Predicated region
    $region18: #{tpu_custom_call.1} parent=1 // pred_check
      _
    $region19: #{tpu_custom_call.1} parent=1 // pred_check_branch
      %47 = sbr.rel (0) target = $region21
    $region20: #{tpu_custom_call.1} parent=1 // pred_region
      %48 = dma.done [#allocation6], 512
    $region21: #{tpu_custom_call.1} parent=1 // pred_fallthru
      _
    // Predicated region
    $region22: #{tpu_custom_call.1} parent=1 // pred_check
      _
    $region23: #{tpu_custom_call.1} parent=1 // pred_check_branch
      %50 = sbr.rel (0) target = $region25
    $region24: #{tpu_custom_call.1} parent=1 // pred_region
      %51 = dma.done [#allocation6], 16
    $region25: #{tpu_custom_call.1} parent=1 // pred_fallthru
      _
    %v52 = vld [vmem:[#allocation2] sm:$0xff]
    %v53 = vld [vmem:[#allocation5] sm:$0xff]
    %v54 = vld [vmem:[#allocation5 + $0x8] sm:$0xff]
    %v55 = vld [vmem:[#allocation5 + $0x10] sm:$0xff]
    %v56 = vld [vmem:[#allocation5 + $0x18] sm:$0xff]
    %v57 = vld [vmem:[#allocation7] sm:$0x1]
    %v59 = vlaneseq
    %v60 = vshrl.u32 %v59, 7
    %v61 = vsub.s32 0, %v60
    %v62 = vrot.slane %v57, %v61
    %vm64 = vcmask 261120
    %v66 = vsel %vm64, %v52, 0
    %68 = vmatprep.subr.mxu0 0.0
    %69 = vmatpush1.msra.mxu0 %v53
    %70 = vmatprep.subr.mxu0 0.0
    %71 = vmatpush1.msra.mxu0 %v54
    %72 = vmatprep.subr.mxu0 0.0
    %73 = vmatpush1.msra.mxu0 %v55
    %74 = vmatprep.subr.mxu0 0.0
    %75 = vmatpush1.msra.mxu0 %v56
    %76 = vmatprep.subr.mxu0 0.0
    %77 = vmatpush1.msra.mxu0 0.0
    %78 = vmatprep.subr.mxu0 0.0
    %79 = vmatpush1.msra.mxu0 0.0
    %80 = vmatprep.subr.mxu0 0.0
    %81 = vmatpush1.msra.mxu0 0.0
    %82 = vmatprep.subr.mxu0 0.0
    %83 = vmatpush1.msra.mxu0 0.0
    %84 = vmatprep.subr.mxu0 0.0
    %85 = vmatpush1.msra.mxu0 0.0
    %86 = vmatprep.subr.mxu0 0.0
    %87 = vmatpush1.msra.mxu0 0.0
    %88 = vmatprep.subr.mxu0 0.0
    %89 = vmatpush1.msra.mxu0 0.0
    %90 = vmatprep.subr.mxu0 0.0
    %91 = vmatpush1.msra.mxu0 0.0
    %92 = vmatprep.subr.mxu0 0.0
    %93 = vmatpush1.msra.mxu0 0.0
    %94 = vmatprep.subr.mxu0 0.0
    %95 = vmatpush1.msra.mxu0 0.0
    %96 = vmatprep.subr.mxu0 0.0
    %97 = vmatpush1.msra.mxu0 0.0
    %98 = vmatprep.subr.mxu0 0.0
    %99 = vmatpush1.msra.mxu0 0.0
    %100 = vmatprep.subr.mxu0 0.0
    %101 = vmatpush1.msra.mxu0 0.0
    %102 = vmatprep.subr.mxu0 0.0
    %103 = vmatpush1.msra.mxu0 0.0
    %104 = vmatprep.subr.mxu0 0.0
    %105 = vmatpush1.msra.mxu0 0.0
    %106 = vmatprep.subr.mxu0 0.0
    %107 = vmatpush1.msra.mxu0 0.0
    %108 = vmatprep.subr.mxu0 0.0
    %109 = vmatpush1.msra.mxu0 0.0
    %110 = vmatprep.subr.mxu0 0.0
    %111 = vmatpush1.msra.mxu0 0.0
    %112 = vmatprep.subr.mxu0 0.0
    %113 = vmatpush1.msra.mxu0 0.0
    %114 = vmatprep.subr.mxu0 0.0
    %115 = vmatpush1.msra.mxu0 0.0
    %116 = vmatprep.subr.mxu0 0.0
    %117 = vmatpush1.msra.mxu0 0.0
    %118 = vmatprep.subr.mxu0 0.0
    %119 = vmatpush1.msra.mxu0 0.0
    %120 = vmatprep.subr.mxu0 0.0
    %121 = vmatpush1.msra.mxu0 0.0
    %122 = vmatprep.subr.mxu0 0.0
    %123 = vmatpush1.msra.mxu0 0.0
    %124 = vmatprep.subr.mxu0 0.0
    %125 = vmatpush1.msra.mxu0 0.0
    %126 = vmatprep.subr.mxu0 0.0
    %127 = vmatpush1.msra.mxu0 0.0
    %128 = vmatprep.subr.mxu0 0.0
    %129 = vmatpush1.msra.mxu0 0.0
    %130 = vmatprep.subr.mxu0 0.0
    %131 = vmatpush1.msra.mxu0 0.0
    %132 = vmatprep.mubr.f32.mxu0 0.0
    %133 = vmatmul.mubr.f32.gmra.mrb[0].mxu0 %v66
    %v134 = vpop.f32.mrb[0].mxu0
    %v135 = vadd.f32 %v62, %v134
    %v136 = vpop.f32.mrb[0].mxu0
    %137 = vdwg.mxu0
    %138 = vmax.xlane.f32.xlu0 %v135
    %v139 = vpop.xlane.xlu0 %138
    %v140 = vsub.f32 %v135, %v139
    %v141 = vmul.f32 %v140, 1.442695
    %v142 = vpow.pop %v141
    %143 = vadd.xlane.f32.xlu0 %v142
    %v144 = vpop.xlane.xlu0 %143
    %v145 = vlog2.pop %v144
    %v146 = vmul.f32 %v145, 0.6931472
    %v147 = vsub.f32 %v140, %v146
    %148 = vst [vmem:[#allocation8] sm:$0xff] %v147
    // Predicated region
    $region26: #{tpu_custom_call.1} parent=1 // pred_check
      _
    $region27: #{tpu_custom_call.1} parent=1 // pred_check_branch
      %150 = sbr.rel (0) target = $region29
    $region28: #{tpu_custom_call.1} parent=1 // pred_region
      %s152 = ssub.s32 128, 128
      %153 = vsyncadd [#allocation4], %s152
      %s155 = sshll.u32 [#allocation8], 4
      %s156 = int_to_ptr.vmem [resolvable:$true] %s155
      %158 = dma.vmem_to_hbm [thread:$0]  %s156, 128, %s3, [#allocation4]
    $region29: #{tpu_custom_call.1} parent=1 // pred_fallthru
      _
    // Predicated region
    $region30: #{tpu_custom_call.1} parent=1 // pred_check
      _
    $region31: #{tpu_custom_call.1} parent=1 // pred_check_branch
      %160 = sbr.rel (0) target = $region33
    $region32: #{tpu_custom_call.1} parent=1 // pred_region
      %161 = dma.done [#allocation4], 128
    $region33: #{tpu_custom_call.1} parent=1 // pred_fallthru
      _
    %162 = vsyncpa [#allocation3], 1
    %163 = vsyncpa [#allocation6], 1
    %164 = vsyncpa [#allocation4], 1

</llo_original>
